<compile_context>
chip_gen: v5e
topology: v5e:2x2
jax: 0.10.0
libtpu: 0.0.40
codegen_flags: <defaults>
</compile_context>

<pallas_src>
import jax
import jax.numpy as jnp
from jax.experimental import pallas as pl
from jax.experimental.pallas import tpu as pltpu

OBS_DIM = 16
HID = 32
NACTION_HEADS = (6, 8)          # args.naction_heads
BATCH = 8

IN_DIM = 2 * OBS_DIM + 2        # 34 = obs_curr(16) | obs_meta(2) | obs_init(16)
N_OUT = 1 + sum(NACTION_HEADS)  # 15 = value(1) | head0(6) | head1(8)
OUT_W = 16                      # packed output width (15 + 1 pad lane)


def alice_kernel(x_ref, we_ref, be_ref, wa_ref, ba_ref, wh_ref, bh_ref, out_ref):
    # Fused encoder: h1 = tanh(x @ [wc; wm; wi] + (bc + bm + bi))
    h1 = jnp.tanh(
        jnp.dot(x_ref[...], we_ref[...], preferred_element_type=jnp.float32)
        + be_ref[...])

    # h2 = tanh(affine2(h1))
    h2 = jnp.tanh(
        jnp.dot(h1, wa_ref[...], preferred_element_type=jnp.float32)
        + ba_ref[...])

    # Fused heads: z = h2 @ [wv | wh0 | wh1] + [bv | bh0 | bh1]   -> [BM, 15]
    z = jnp.dot(h2, wh_ref[...], preferred_element_type=jnp.float32) + bh_ref[...]

    def log_softmax(l):
        m = jnp.max(l, axis=-1, keepdims=True)
        ls = l - m
        return ls - jnp.log(jnp.sum(jnp.exp(ls), axis=-1, keepdims=True))

    v = z[:, 0:1]
    lp0 = log_softmax(z[:, 1:1 + NACTION_HEADS[0]])
    lp1 = log_softmax(z[:, 1 + NACTION_HEADS[0]:N_OUT])
    pad = jnp.zeros((z.shape[0], OUT_W - N_OUT), jnp.float32)

    # Single packed, lane-contiguous store -> one writeback DMA per block.
    out_ref[...] = jnp.concatenate([v, lp0, lp1, pad], axis=-1)


def pack_params(params):
    """Fold the 14 per-layer tensors into 6 lane/row-dense slabs (done once)."""
    (wc, bc, wi, bi, wm, bm, wa, ba, wv, bv, wh0, bh0, wh1, bh1) = params
    # Row order must match x's column layout: [obs_curr | obs_meta | obs_init].
    w_enc = jnp.concatenate([wc, wm, wi], axis=0)          # [34, 32]
    b_enc = bc + bm + bi                                   # [1, 32]
    w_heads = jnp.concatenate([wv, wh0, wh1], axis=1)      # [32, 15]
    b_heads = jnp.concatenate([bv, bh0, bh1], axis=1)      # [1, 15]
    return w_enc, b_enc, wa, ba, w_heads, b_heads


def alice_forward(x, packed, *, block_b=256):
    """x: [B, 2*obs_dim + 2] float32. Returns ([logp0, logp1], v)."""
    B = x.shape[0]
    w_enc, b_enc, wa, ba, w_heads, b_heads = packed

    # Batch tile: multiple of 8 (sublane), capped at block_b; pad B up to it.
    bm = min(block_b, max(8, ((B + 7) // 8) * 8))
    b_pad = ((B + bm - 1) // bm) * bm
    if b_pad != B:
        x = jnp.pad(x, ((0, b_pad - B), (0, 0)))
    grid = (b_pad // bm,)

    def resident(arr):
        # Full-array block, constant index -> loaded once, stays in VMEM.
        return pl.BlockSpec(arr.shape, lambda i: (0, 0))

    out = pl.pallas_call(
        alice_kernel,
        out_shape=jax.ShapeDtypeStruct((b_pad, OUT_W), jnp.float32),
        grid_spec=pltpu.PrefetchScalarGridSpec(
            num_scalar_prefetch=0,
            grid=grid,
            in_specs=[
                pl.BlockSpec((bm, IN_DIM), lambda i: (i, 0)),
                resident(w_enc), resident(b_enc),
                resident(wa), resident(ba),
                resident(w_heads), resident(b_heads),
            ],
            out_specs=pl.BlockSpec((bm, OUT_W), lambda i: (i, 0)),
        ),
        compiler_params=pltpu.CompilerParams(
            dimension_semantics=("parallel",)),
    )(x, w_enc, b_enc, wa, ba, w_heads, b_heads)

    out = out[:B]
    v = out[:, 0:1]
    logp0 = out[:, 1:1 + NACTION_HEADS[0]]
    logp1 = out[:, 1 + NACTION_HEADS[0]:N_OUT]
    return [logp0, logp1], v


def init_params(key):
    """Deterministic parameter init. Weights stored as [in, out]."""
    ks = jax.random.split(key, 16)

    def lin(kw, kb, din, dout):
        w = jax.random.normal(kw, (din, dout), jnp.float32) * 0.1
        b = jax.random.normal(kb, (1, dout), jnp.float32) * 0.1
        return w, b

    wc, bc = lin(ks[0], ks[1], OBS_DIM, HID)                 # enc_obs_curr
    wi, bi = lin(ks[2], ks[3], OBS_DIM, HID)                 # enc_obs_init
    wm, bm = lin(ks[4], ks[5], 2, HID)                       # enc_meta
    wa, ba = lin(ks[6], ks[7], HID, HID)                     # affine2
    wv, bv = lin(ks[8], ks[9], HID, 1)                       # value_head
    wh0, bh0 = lin(ks[10], ks[11], HID, NACTION_HEADS[0])    # heads[0]
    wh1, bh1 = lin(ks[12], ks[13], HID, NACTION_HEADS[1])    # heads[1]
    return (wc, bc, wi, bi, wm, bm, wa, ba, wv, bv, wh0, bh0, wh1, bh1)


def reference_forward(x, params):
    (wc, bc, wi, bi, wm, bm, wa, ba, wv, bv, wh0, bh0, wh1, bh1) = params
    xc = x[:, :OBS_DIM]
    xm = x[:, OBS_DIM:OBS_DIM + 2]
    xi = x[:, OBS_DIM + 2:2 * OBS_DIM + 2]
    h1 = jnp.tanh(xc @ wc + bc + xi @ wi + bi + xm @ wm + bm)
    h2 = jnp.tanh(h1 @ wa + ba)
    v = h2 @ wv + bv
    logp0 = jax.nn.log_softmax(h2 @ wh0 + bh0, axis=-1)
    logp1 = jax.nn.log_softmax(h2 @ wh1 + bh1, axis=-1)
    return [logp0, logp1], v


if __name__ == "__main__":
    key = jax.random.PRNGKey(0)
    k_x, k_p, k_x2 = jax.random.split(key, 3)
    params = init_params(k_p)
    packed = pack_params(params)

    # Small batch (same shape as the original module's test).
    x = jax.random.normal(k_x, (BATCH, IN_DIM), jnp.float32)
    (logp0, logp1), v = alice_forward(x, packed)
    jax.block_until_ready((logp0, logp1, v))
    (r0, r1), rv = reference_forward(x, params)
    assert jnp.allclose(logp0, r0, atol=1e-5), "head 0 mismatch"
    assert jnp.allclose(logp1, r1, atol=1e-5), "head 1 mismatch"
    assert jnp.allclose(v, rv, atol=1e-5), "value mismatch"

    # Larger rollout-style batch: exercises batch tiling + padding + parallel grid.
    xb = jax.random.normal(k_x2, (200, IN_DIM), jnp.float32)
    (bl0, bl1), bv_ = alice_forward(xb, packed, block_b=64)   # grid=(4,)
    jax.block_until_ready((bl0, bl1, bv_))
    (rb0, rb1), rbv = reference_forward(xb, params)
    assert jnp.allclose(bl0, rb0, atol=1e-5), "batched head 0 mismatch"
    assert jnp.allclose(bl1, rb1, atol=1e-5), "batched head 1 mismatch"
    assert jnp.allclose(bv_, rbv, atol=1e-5), "batched value mismatch"

    print("KERNEL_OK")
</pallas_src>

<mosaic_0001>
module attributes {stable_mosaic.version = 11 : i64} {
  func.func @alice_kernel(%arg0: i32, %arg1: memref<8x34xf32, #tpu.memory_space<vmem>>, %arg2: memref<34x32xf32, #tpu.memory_space<vmem>>, %arg3: memref<1x32xf32, #tpu.memory_space<vmem>>, %arg4: memref<32x32xf32, #tpu.memory_space<vmem>>, %arg5: memref<1x32xf32, #tpu.memory_space<vmem>>, %arg6: memref<32x15xf32, #tpu.memory_space<vmem>>, %arg7: memref<1x15xf32, #tpu.memory_space<vmem>>, %arg8: memref<8x16xf32, #tpu.memory_space<vmem>>) attributes {dimension_semantics = [#tpu.dimension_semantics<parallel>], iteration_bounds = array<i64: 1>, scalar_prefetch = 0 : i64, scratch_operands = 0 : i64, tpu.core_type = #tpu.core_type<tc>, window_params = [{transform_indices = @transform_0, window_bounds = array<i64: 8, 34>}, {pipeline_mode = #tpu.pipeline_mode<synchronous>, transform_indices = @transform_1, window_bounds = array<i64: 34, 32>}, {pipeline_mode = #tpu.pipeline_mode<synchronous>, transform_indices = @transform_2, window_bounds = array<i64: 1, 32>}, {pipeline_mode = #tpu.pipeline_mode<synchronous>, transform_indices = @transform_3, window_bounds = array<i64: 32, 32>}, {pipeline_mode = #tpu.pipeline_mode<synchronous>, transform_indices = @transform_4, window_bounds = array<i64: 1, 32>}, {pipeline_mode = #tpu.pipeline_mode<synchronous>, transform_indices = @transform_5, window_bounds = array<i64: 32, 15>}, {pipeline_mode = #tpu.pipeline_mode<synchronous>, transform_indices = @transform_6, window_bounds = array<i64: 1, 15>}, {transform_indices = @transform_7, window_bounds = array<i64: 8, 16>}]} {
    %c0 = arith.constant 0 : index
    %c0_0 = arith.constant 0 : index
    %0 = vector.load %arg1[%c0, %c0_0] : memref<8x34xf32, #tpu.memory_space<vmem>>, vector<8x34xf32>
    %c0_1 = arith.constant 0 : index
    %c0_2 = arith.constant 0 : index
    %1 = vector.load %arg2[%c0_1, %c0_2] : memref<34x32xf32, #tpu.memory_space<vmem>>, vector<34x32xf32>
    %cst = arith.constant dense<0.000000e+00> : vector<8x32xf32>
    %2 = tpu.matmul %0, %1, %cst {dimension_numbers = #tpu.dot_dimension_numbers<[1], [0], [0], [1], [0, 0, 1, 1], [], []>} : vector<8x34xf32>, vector<34x32xf32>, vector<8x32xf32> -> vector<8x32xf32>
    %c0_3 = arith.constant 0 : index
    %c0_4 = arith.constant 0 : index
    %3 = vector.load %arg3[%c0_3, %c0_4] : memref<1x32xf32, #tpu.memory_space<vmem>>, vector<1x32xf32>
    %4 = vector.broadcast %3 : vector<1x32xf32> to vector<8x32xf32>
    %5 = arith.addf %2, %4 : vector<8x32xf32>
    %6 = math.tanh %5 : vector<8x32xf32>
    %c0_5 = arith.constant 0 : index
    %c0_6 = arith.constant 0 : index
    %7 = vector.load %arg4[%c0_5, %c0_6] : memref<32x32xf32, #tpu.memory_space<vmem>>, vector<32x32xf32>
    %cst_7 = arith.constant dense<0.000000e+00> : vector<8x32xf32>
    %8 = tpu.matmul %6, %7, %cst_7 {dimension_numbers = #tpu.dot_dimension_numbers<[1], [0], [0], [1], [0, 0, 1, 1], [], []>} : vector<8x32xf32>, vector<32x32xf32>, vector<8x32xf32> -> vector<8x32xf32>
    %c0_8 = arith.constant 0 : index
    %c0_9 = arith.constant 0 : index
    %9 = vector.load %arg5[%c0_8, %c0_9] : memref<1x32xf32, #tpu.memory_space<vmem>>, vector<1x32xf32>
    %10 = vector.broadcast %9 : vector<1x32xf32> to vector<8x32xf32>
    %11 = arith.addf %8, %10 : vector<8x32xf32>
    %12 = math.tanh %11 : vector<8x32xf32>
    %c0_10 = arith.constant 0 : index
    %c0_11 = arith.constant 0 : index
    %13 = vector.load %arg6[%c0_10, %c0_11] : memref<32x15xf32, #tpu.memory_space<vmem>>, vector<32x15xf32>
    %cst_12 = arith.constant dense<0.000000e+00> : vector<8x15xf32>
    %14 = tpu.matmul %12, %13, %cst_12 {dimension_numbers = #tpu.dot_dimension_numbers<[1], [0], [0], [1], [0, 0, 1, 1], [], []>} : vector<8x32xf32>, vector<32x15xf32>, vector<8x15xf32> -> vector<8x15xf32>
    %c0_13 = arith.constant 0 : index
    %c0_14 = arith.constant 0 : index
    %15 = vector.load %arg7[%c0_13, %c0_14] : memref<1x15xf32, #tpu.memory_space<vmem>>, vector<1x15xf32>
    %16 = vector.broadcast %15 : vector<1x15xf32> to vector<8x15xf32>
    %17 = arith.addf %14, %16 : vector<8x15xf32>
    %18 = vector.extract_strided_slice %17 {offsets = [0, 0], sizes = [8, 1], strides = [1, 1]} : vector<8x15xf32> to vector<8x1xf32>
    %19 = vector.extract_strided_slice %17 {offsets = [0, 1], sizes = [8, 6], strides = [1, 1]} : vector<8x15xf32> to vector<8x6xf32>
    %cst_15 = arith.constant dense<0xFF800000> : vector<8xf32>
    %20 = vector.multi_reduction <maximumf>, %19, %cst_15 [1] : vector<8x6xf32> to vector<8xf32>
    %21 = vector.shape_cast %20 : vector<8xf32> to vector<8x1xf32>
    %22 = vector.broadcast %21 : vector<8x1xf32> to vector<8x6xf32>
    %23 = arith.subf %19, %22 : vector<8x6xf32>
    %24 = math.exp %23 : vector<8x6xf32>
    %cst_16 = arith.constant dense<0.000000e+00> : vector<8xf32>
    %25 = vector.multi_reduction <add>, %24, %cst_16 [1] : vector<8x6xf32> to vector<8xf32>
    %26 = vector.shape_cast %25 : vector<8xf32> to vector<8x1xf32>
    %27 = math.log %26 : vector<8x1xf32>
    %28 = vector.broadcast %27 : vector<8x1xf32> to vector<8x6xf32>
    %29 = arith.subf %23, %28 : vector<8x6xf32>
    %30 = vector.extract_strided_slice %17 {offsets = [0, 7], sizes = [8, 8], strides = [1, 1]} : vector<8x15xf32> to vector<8x8xf32>
    %cst_17 = arith.constant dense<0xFF800000> : vector<8xf32>
    %31 = vector.multi_reduction <maximumf>, %30, %cst_17 [1] : vector<8x8xf32> to vector<8xf32>
    %32 = vector.shape_cast %31 : vector<8xf32> to vector<8x1xf32>
    %33 = vector.broadcast %32 : vector<8x1xf32> to vector<8x8xf32>
    %34 = arith.subf %30, %33 : vector<8x8xf32>
    %35 = math.exp %34 : vector<8x8xf32>
    %cst_18 = arith.constant dense<0.000000e+00> : vector<8xf32>
    %36 = vector.multi_reduction <add>, %35, %cst_18 [1] : vector<8x8xf32> to vector<8xf32>
    %37 = vector.shape_cast %36 : vector<8xf32> to vector<8x1xf32>
    %38 = math.log %37 : vector<8x1xf32>
    %39 = vector.broadcast %38 : vector<8x1xf32> to vector<8x8xf32>
    %40 = arith.subf %34, %39 : vector<8x8xf32>
    %cst_19 = arith.constant 0.000000e+00 : f32
    %41 = vector.broadcast %cst_19 : f32 to vector<8x1xf32>
    %42 = tpu.concatenate %18, %29, %40, %41 in 1 : vector<8x1xf32>, vector<8x6xf32>, vector<8x8xf32>, vector<8x1xf32> -> vector<8x16xf32>
    %c0_20 = arith.constant 0 : index
    %c0_21 = arith.constant 0 : index
    %43 = vector.load %arg8[%c0_20, %c0_21] : memref<8x16xf32, #tpu.memory_space<vmem>>, vector<8x16xf32>
    tpu.vector_store %arg8[%c0_20, %c0_21], %42 {strides = array<i32>} : memref<8x16xf32, #tpu.memory_space<vmem>>, vector<8x16xf32>,
    return
  }
  func.func @transform_0(%arg0: i32) -> (i32, i32) {
    %c0_i32 = arith.constant 0 : i32
    %c0_i32_0 = arith.constant 0 : i32
    return %arg0, %c0_i32 : i32, i32
  }
  func.func @transform_1(%arg0: i32) -> (i32, i32) {
    %c0_i32 = arith.constant 0 : i32
    %c0_i32_0 = arith.constant 0 : i32
    %c0_i32_1 = arith.constant 0 : i32
    return %c0_i32, %c0_i32_0 : i32, i32
  }
  func.func @transform_2(%arg0: i32) -> (i32, i32) {
    %c0_i32 = arith.constant 0 : i32
    %c0_i32_0 = arith.constant 0 : i32
    %c0_i32_1 = arith.constant 0 : i32
    return %c0_i32, %c0_i32_0 : i32, i32
  }
  func.func @transform_3(%arg0: i32) -> (i32, i32) {
    %c0_i32 = arith.constant 0 : i32
    %c0_i32_0 = arith.constant 0 : i32
    %c0_i32_1 = arith.constant 0 : i32
    return %c0_i32, %c0_i32_0 : i32, i32
  }
  func.func @transform_4(%arg0: i32) -> (i32, i32) {
    %c0_i32 = arith.constant 0 : i32
    %c0_i32_0 = arith.constant 0 : i32
    %c0_i32_1 = arith.constant 0 : i32
    return %c0_i32, %c0_i32_0 : i32, i32
  }
  func.func @transform_5(%arg0: i32) -> (i32, i32) {
    %c0_i32 = arith.constant 0 : i32
    %c0_i32_0 = arith.constant 0 : i32
    %c0_i32_1 = arith.constant 0 : i32
    return %c0_i32, %c0_i32_0 : i32, i32
  }
  func.func @transform_6(%arg0: i32) -> (i32, i32) {
    %c0_i32 = arith.constant 0 : i32
    %c0_i32_0 = arith.constant 0 : i32
    %c0_i32_1 = arith.constant 0 : i32
    return %c0_i32, %c0_i32_0 : i32, i32
  }
  func.func @transform_7(%arg0: i32) -> (i32, i32) {
    %c0_i32 = arith.constant 0 : i32
    %c0_i32_0 = arith.constant 0 : i32
    return %arg0, %c0_i32 : i32, i32
  }
}

</mosaic_0001>

<llo_original>
// kernel: tpu_custom_call.1
$region0: #{tpu_custom_call.1}
  #allocation0 [shape = 'u32[]', space=smem, size = 0x4, offset = 0x4, fixed_abs, tag = 'smem constant byte address 0x4 - core index']
  #allocation1 [shape = 'u32[72,128]{1,0:T(1,128)}', space=vmem, size = 0x9000, scoped, tag = 'internal scratch']
  %s0 = inlined_call_operand.vmem [shape: f32[8,34], index: 0, kind: input, shape index: {}]
  %s1 = inlined_call_operand.vmem [shape: f32[34,32], index: 1, kind: input, shape index: {}]
  %s2 = inlined_call_operand.vmem [shape: f32[1,32], index: 2, kind: input, shape index: {}]
  %s3 = inlined_call_operand.vmem [shape: f32[32,32], index: 3, kind: input, shape index: {}]
  %s4 = inlined_call_operand.vmem [shape: f32[1,32], index: 4, kind: input, shape index: {}]
  %s5 = inlined_call_operand.vmem [shape: f32[32,15], index: 5, kind: input, shape index: {}]
  %s6 = inlined_call_operand.vmem [shape: f32[1,15], index: 6, kind: input, shape index: {}]
  %s7 = inlined_call_operand.hbm [shape: f32[8,16], index: 7, kind: output, shape index: {}]
  %s8 = sld [smem:[#allocation0]]
  $region38: #{tpu_custom_call.1} parent=0
    _
  %s10 = ssub.s32 1, %s8
  %s11 = scalar_select 0, %s10, %s8
  $region1: #{tpu_custom_call.1} parent=0
    #allocation2 [shape = 'u8[4096]{0}', space=vmem, size = 0x1000, scoped, tag = 'output window, operand 0, single buffered']
    #allocation3 [shape = 's32[1]{0}', space=sflag, size = 0x4, scoped, tag = 'scoped memory for tpu_custom_call.1']
    %12 = vsyncpa [#allocation3], 0
    // Predicated region
    $region2: #{tpu_custom_call.1} parent=1 // pred_check
      _
    $region3: #{tpu_custom_call.1} parent=1 // pred_check_branch
      %14 = sbr.rel (0) target = $region5
    $region4: #{tpu_custom_call.1} parent=1 // pred_region
      _
    $region5: #{tpu_custom_call.1} parent=1 // pred_fallthru
      _
    // Predicated region
    $region6: #{tpu_custom_call.1} parent=1 // pred_check
      _
    $region7: #{tpu_custom_call.1} parent=1 // pred_check_branch
      %16 = sbr.rel (0) target = $region9
    $region8: #{tpu_custom_call.1} parent=1 // pred_region
      _
    $region9: #{tpu_custom_call.1} parent=1 // pred_fallthru
      _
    // Predicated region
    $region10: #{tpu_custom_call.1} parent=1 // pred_check
      _
    $region11: #{tpu_custom_call.1} parent=1 // pred_check_branch
      %18 = sbr.rel (0) target = $region13
    $region12: #{tpu_custom_call.1} parent=1 // pred_region
      _
    $region13: #{tpu_custom_call.1} parent=1 // pred_fallthru
      _
    // Predicated region
    $region14: #{tpu_custom_call.1} parent=1 // pred_check
      _
    $region15: #{tpu_custom_call.1} parent=1 // pred_check_branch
      %20 = sbr.rel (0) target = $region17
    $region16: #{tpu_custom_call.1} parent=1 // pred_region
      _
    $region17: #{tpu_custom_call.1} parent=1 // pred_fallthru
      _
    // Predicated region
    $region18: #{tpu_custom_call.1} parent=1 // pred_check
      _
    $region19: #{tpu_custom_call.1} parent=1 // pred_check_branch
      %22 = sbr.rel (0) target = $region21
    $region20: #{tpu_custom_call.1} parent=1 // pred_region
      _
    $region21: #{tpu_custom_call.1} parent=1 // pred_fallthru
      _
    // Predicated region
    $region22: #{tpu_custom_call.1} parent=1 // pred_check
      _
    $region23: #{tpu_custom_call.1} parent=1 // pred_check_branch
      %24 = sbr.rel (0) target = $region25
    $region24: #{tpu_custom_call.1} parent=1 // pred_region
      _
    $region25: #{tpu_custom_call.1} parent=1 // pred_fallthru
      _
    // Predicated region
    $region26: #{tpu_custom_call.1} parent=1 // pred_check
      _
    $region27: #{tpu_custom_call.1} parent=1 // pred_check_branch
      %26 = sbr.rel (0) target = $region29
    $region28: #{tpu_custom_call.1} parent=1 // pred_region
      _
    $region29: #{tpu_custom_call.1} parent=1 // pred_fallthru
      _
    %v27 = vld [vmem:[%s0] sm:$0xff]
    %v28 = vld [vmem:[%s1] sm:$0xff]
    %v29 = vld [vmem:[%s1 + $0x8] sm:$0xff]
    %v30 = vld [vmem:[%s1 + $0x10] sm:$0xff]
    %v31 = vld [vmem:[%s1 + $0x18] sm:$0xff]
    %v32 = vld [vmem:[%s1 + $0x20] sm:$0x3]
    %v33 = vld [vmem:[%s2] sm:$0x1]
    %v35 = vperm.slane %v33, 0
    %vm37 = vcmask 277504
    %v39 = vsel %vm37, %v27, 0
    %vm41 = vcmask 1041408
    %v43 = vsel %vm41, %v32, 0
    %45 = vmatpush.msra.mxu0 0.0
    %46 = vmatpush.msra.mxu0 0.0
    %47 = vmatpush.msra.mxu0 0.0
    %48 = vmatpush.msra.mxu0 0.0
    %49 = vmatpush.msra.mxu0 0.0
    %50 = vmatpush.msra.mxu0 0.0
    %51 = vmatpush.msra.mxu0 0.0
    %52 = vmatpush.msra.mxu0 0.0
    %53 = vmatpush.msra.mxu0 0.0
    %54 = vmatpush.msra.mxu0 0.0
    %55 = vmatpush.msra.mxu0 0.0
    %56 = vmatpush.msra.mxu0 %v43
    %57 = vmatpush.msra.mxu0 %v31
    %58 = vmatpush.msra.mxu0 %v30
    %59 = vmatpush.msra.mxu0 %v29
    %60 = vmatpush.msra.mxu0 %v28
    %61 = vmatmul.f32.gmra.mxu0 %v39
    %v62 = vpop.f32.mrf.mxu0
    %v63 = vadd.f32 %v35, %v62
    %64 = vdwg.mxu0
    %v65 = vtanh.pop %v63
    %v66 = vld [vmem:[%s3] sm:$0xff]
    %v67 = vld [vmem:[%s3 + $0x8] sm:$0xff]
    %v68 = vld [vmem:[%s3 + $0x10] sm:$0xff]
    %v69 = vld [vmem:[%s3 + $0x18] sm:$0xff]
    %v70 = vld [vmem:[%s4] sm:$0x1]
    %v72 = vperm.slane %v70, 0
    %vm74 = vcmask 261120
    %v76 = vsel %vm74, %v65, 0
    %78 = vmatpush.msra.mxu0 0.0
    %79 = vmatpush.msra.mxu0 0.0
    %80 = vmatpush.msra.mxu0 0.0
    %81 = vmatpush.msra.mxu0 0.0
    %82 = vmatpush.msra.mxu0 0.0
    %83 = vmatpush.msra.mxu0 0.0
    %84 = vmatpush.msra.mxu0 0.0
    %85 = vmatpush.msra.mxu0 0.0
    %86 = vmatpush.msra.mxu0 0.0
    %87 = vmatpush.msra.mxu0 0.0
    %88 = vmatpush.msra.mxu0 0.0
    %89 = vmatpush.msra.mxu0 0.0
    %90 = vmatpush.msra.mxu0 %v69
    %91 = vmatpush.msra.mxu0 %v68
    %92 = vmatpush.msra.mxu0 %v67
    %93 = vmatpush.msra.mxu0 %v66
    %94 = vmatmul.f32.gmra.mxu0 %v76
    %v95 = vpop.f32.mrf.mxu0
    %v96 = vadd.f32 %v72, %v95
    %97 = vdwg.mxu0
    %v98 = vtanh.pop %v96
    %v99 = vld [vmem:[%s5] sm:$0xff]
    %v100 = vld [vmem:[%s5 + $0x8] sm:$0xff]
    %v101 = vld [vmem:[%s5 + $0x10] sm:$0xff]
    %v102 = vld [vmem:[%s5 + $0x18] sm:$0xff]
    %v103 = vld [vmem:[%s6] sm:$0x1]
    %v105 = vperm.slane %v103, 0
    %v108 = vsel %vm74, %v98, 0
    %110 = vmatpush.msra.mxu0 0.0
    %111 = vmatpush.msra.mxu0 0.0
    %112 = vmatpush.msra.mxu0 0.0
    %113 = vmatpush.msra.mxu0 0.0
    %114 = vmatpush.msra.mxu0 0.0
    %115 = vmatpush.msra.mxu0 0.0
    %116 = vmatpush.msra.mxu0 0.0
    %117 = vmatpush.msra.mxu0 0.0
    %118 = vmatpush.msra.mxu0 0.0
    %119 = vmatpush.msra.mxu0 0.0
    %120 = vmatpush.msra.mxu0 0.0
    %121 = vmatpush.msra.mxu0 0.0
    %122 = vmatpush.msra.mxu0 %v102
    %123 = vmatpush.msra.mxu0 %v101
    %124 = vmatpush.msra.mxu0 %v100
    %125 = vmatpush.msra.mxu0 %v99
    %126 = vmatmul.f32.gmra.mxu0 %v108
    %v127 = vpop.f32.mrf.mxu0
    %v128 = vadd.f32 %v105, %v127
    %129 = vdwg.mxu0
    %vm130 = vcmask 56328
    %v131 = vsel %vm130, %v128, -inf
    %132 = vmax.xlane.f32.xlu0 %v131
    %v133 = vpop.xlane.xlu0 %132
    %v134 = vsub.f32 %v128, %v133
    %v135 = vmul.f32 %v134, 1.442695
    %v136 = vpow.pop %v135
    %138 = vrot.lane.b32.xlu0 %v136, 127
    %v139 = vpop.permute.xlu0 %138
    %vm141 = vcmask 48128
    %v142 = vsel %vm141, %v139, 0.0
    %143 = vadd.xlane.f32.xlu0 %v142
    %v144 = vpop.xlane.xlu0 %143
    %v145 = vlog2.pop %v144
    %v146 = vmul.f32 %v145, 0.6931472
    %v147 = vsub.f32 %v134, %v146
    %vm148 = vcmask 121912
    %v149 = vsel %vm148, %v128, -inf
    %150 = vmax.xlane.f32.xlu0 %v149
    %v151 = vpop.xlane.xlu0 %150
    %v152 = vsub.f32 %v128, %v151
    %v153 = vmul.f32 %v152, 1.442695
    %v154 = vpow.pop %v153
    %156 = vrot.lane.b32.xlu0 %v154, 121
    %v157 = vpop.permute.xlu0 %156
    %vm159 = vcmask 64512
    %v160 = vsel %vm159, %v157, 0.0
    %161 = vadd.xlane.f32.xlu0 %v160
    %v162 = vpop.xlane.xlu0 %161
    %v163 = vlog2.pop %v162
    %v164 = vmul.f32 %v163, 0.6931472
    %v165 = vsub.f32 %v152, %v164
    %vm166 = vcmask 7168
    %v167 = vsel %vm166, %v128, %v147
    %vm168 = vcmask 56320
    %v169 = vsel %vm168, %v167, %v165
    %vm170 = vcmask 121856
    %v171 = vsel %vm170, %v169, 0.0
    %vm172 = vcmask 130048
    %173 = vst.msk [vmem:[#allocation2] sm:$0xff] %vm172, %v171
    // Predicated region
    $region30: #{tpu_custom_call.1} parent=1 // pred_check
      _
    $region31: #{tpu_custom_call.1} parent=1 // pred_check_branch
      %175 = sbr.rel (0) target = $region33
    $region32: #{tpu_custom_call.1} parent=1 // pred_region
      %177 = vsyncadd [#allocation3], 0
      %s179 = sshll.u32 [#allocation2], 4
      %s180 = int_to_ptr.vmem [resolvable:$true] %s179
      %s181 = sshll.u32 %s7, 4
      %s182 = int_to_ptr.hbm [resolvable:$true] %s181
      %184 = dma.vmem_to_hbm [thread:$0]  %s180, 128, %s182, [#allocation3]
    $region33: #{tpu_custom_call.1} parent=1 // pred_fallthru
      _
    // Predicated region
    $region34: #{tpu_custom_call.1} parent=1 // pred_check
      _
    $region35: #{tpu_custom_call.1} parent=1 // pred_check_branch
      %186 = sbr.rel (0) target = $region37
    $region36: #{tpu_custom_call.1} parent=1 // pred_region
      %188 = dma.done [#allocation3], 128
    $region37: #{tpu_custom_call.1} parent=1 // pred_fallthru
      _
    %189 = vsyncpa [#allocation3], 1

</llo_original>
